<compile_context>
chip_gen: v7x
topology: tpu7x:2x2x1
jax: 0.10.0
libtpu: 0.0.40
codegen_flags: <defaults>
</compile_context>

<pallas_src>
import functools

import numpy as np
import jax
import jax.numpy as jnp
from jax.experimental import pallas as pl
from jax.experimental.pallas import tpu as pltpu

_LANES = 128
_SUBLANES = 8


def _round_up(x, m):
    return ((x + m - 1) // m) * m


def _default_max_tile_sublanes():
    # v5e/v6e are already at the ~86% HBM-roofline plateau at 1024 sublanes; v7x
    # (3.2 TB/s per TC) wants 2048+ to amortize the ~0.35us per-grid-step overhead.
    try:
        kind = jax.devices()[0].device_kind.lower()
    except Exception:
        return 1024
    if "v5" in kind:
        return 1024
    return 2048


def _vmem_limit(block_bytes):
    # Double-buffered in+out blocks plus headroom, capped well below v7x's 64 MiB.
    return int(min(48 * 2 ** 20, max(32 * 2 ** 20, 3 * int(block_bytes))))


# ---------------------------------------------------------------------------
# 1x1x1 conv (scale_factor == 1)
# ---------------------------------------------------------------------------

def _conv_kernel_dense(w_ref, b_ref, x_ref, o_ref):
    """x_ref: (1, Cin, ts1, 128), o_ref: (1, Cout, ts1, 128).

    VPU channel mix, input-channel loop outer so every dense (ts1, 128) slab is
    loaded exactly once; Cout accumulators stay in vregs.
    """
    cin = x_ref.shape[1]
    cout = o_ref.shape[1]
    accs = [None] * cout
    for c in range(cin):
        xc = x_ref[0, c].astype(jnp.float32)
        for o in range(cout):
            t = xc * w_ref[o, c]
            accs[o] = t if accs[o] is None else accs[o] + t
    for o in range(cout):
        o_ref[0, o] = (accs[o] + b_ref[o]).astype(o_ref.dtype)


def _conv_kernel_flat(w_ref, b_ref, x_ref, o_ref):
    """Ragged-S variant: x_ref (1, Cin, ts), o_ref (1, Cout, ts); Pallas masks the tail."""
    cin = x_ref.shape[1]
    cout = o_ref.shape[1]
    accs = [None] * cout
    for c in range(cin):
        xc = x_ref[0, c, :].astype(jnp.float32)
        for o in range(cout):
            t = xc * w_ref[o, c]
            accs[o] = t if accs[o] is None else accs[o] + t
    for o in range(cout):
        o_ref[0, o, :] = (accs[o] + b_ref[o]).astype(o_ref.dtype)


def conv3d_1x1_pallas(x, weight, bias, *, max_tile_sublanes=None):
    """Pointwise (kernel_size=1) Conv3d in NCDHW layout.

    x: (N, Cin, D, H, W); weight: (Cout, Cin) [or (Cout, Cin, 1, 1, 1)]; bias: (Cout,)
    """
    N, Cin, D, H, W = x.shape
    Cout = weight.shape[0]
    S = D * H * W
    if max_tile_sublanes is None:
        max_tile_sublanes = _default_max_tile_sublanes()

    w_f32 = weight.reshape(Cout, Cin).astype(jnp.float32)
    b_f32 = bias.astype(jnp.float32)
    itemsize = x.dtype.itemsize
    cost = pl.CostEstimate(
        flops=int(2 * Cin * Cout * N * S),
        transcendentals=0,
        bytes_accessed=int((Cin + Cout) * N * S * itemsize),
    )
    smem = pl.BlockSpec(memory_space=pltpu.MemorySpace.SMEM)

    if S % _LANES == 0:
        # Zero-copy reshape to (N, Cin, S1, 128): each channel slab is a dense
        # (sublane, lane) tile -> lane-dense vld AND vst, no NCDHW<->NDHWC transpose.
        S1 = S // _LANES
        x4 = x.reshape(N, Cin, S1, _LANES)
        if S1 <= _SUBLANES:
            ts1 = S1
        else:
            # ~4 spatial steps per batch so the BlockSpec double-buffer can overlap
            # DMA with compute (and >= 2 parallel steps for v7x's two TensorCores).
            target = _round_up(max(_SUBLANES, -(-S1 // 4)), _SUBLANES)
            ts1 = max(_SUBLANES,
                      min(target, max_tile_sublanes, (S1 // _SUBLANES) * _SUBLANES))
        grid = (N, pl.cdiv(S1, ts1))
        blk_bytes = (Cin + Cout) * ts1 * _LANES * itemsize
        out4 = pl.pallas_call(
            _conv_kernel_dense,
            out_shape=jax.ShapeDtypeStruct((N, Cout, S1, _LANES), x.dtype),
            grid_spec=pltpu.PrefetchScalarGridSpec(
                num_scalar_prefetch=0,
                grid=grid,
                in_specs=[
                    smem,  # weight (Cout, Cin)
                    smem,  # bias   (Cout,)
                    pl.BlockSpec((1, Cin, ts1, _LANES), lambda n, s: (n, 0, s, 0)),
                ],
                out_specs=pl.BlockSpec((1, Cout, ts1, _LANES),
                                       lambda n, s: (n, 0, s, 0)),
            ),
            compiler_params=pltpu.CompilerParams(
                dimension_semantics=("parallel", "parallel"),
                vmem_limit_bytes=_vmem_limit(blk_bytes),
            ),
            cost_estimate=cost,
        )(w_f32, b_f32, x4)
        return out4.reshape(N, Cout, D, H, W)

    # Ragged S (not a multiple of 128): no host-side pad/slice HBM round trips --
    # operate directly on the flat (N, Cin, S) view and let Pallas mask the partial
    # last lane block.
    x3 = x.reshape(N, Cin, S)
    if S <= _LANES:
        ts = S
    else:
        target = _round_up(max(_LANES, -(-S // 4)), _LANES)
        ts = max(_LANES,
                 min(target, max_tile_sublanes * _LANES, (S // _LANES) * _LANES))
    grid = (N, pl.cdiv(S, ts))
    blk_bytes = (Cin + Cout) * ts * itemsize
    out3 = pl.pallas_call(
        _conv_kernel_flat,
        out_shape=jax.ShapeDtypeStruct((N, Cout, S), x.dtype),
        grid_spec=pltpu.PrefetchScalarGridSpec(
            num_scalar_prefetch=0,
            grid=grid,
            in_specs=[
                smem,
                smem,
                pl.BlockSpec((1, Cin, ts), lambda n, s: (n, 0, s)),
            ],
            out_specs=pl.BlockSpec((1, Cout, ts), lambda n, s: (n, 0, s)),
        ),
        compiler_params=pltpu.CompilerParams(
            dimension_semantics=("parallel", "parallel"),
            vmem_limit_bytes=_vmem_limit(blk_bytes),
        ),
        cost_estimate=cost,
    )(w_f32, b_f32, x3)
    return out3.reshape(N, Cout, D, H, W)


# ---------------------------------------------------------------------------
# Fused 1x1x1 conv + trilinear upsample (scale_factor > 1, align_corners=False)
# ---------------------------------------------------------------------------

def _interp_matrix(n_in, scale):
    """PyTorch linear-upsample (align_corners=False) weights as a (n_out, n_in) matrix."""
    n_out = n_in * scale
    dst = np.arange(n_out, dtype=np.float64)
    src = np.maximum((dst + 0.5) / scale - 0.5, 0.0)
    i0 = np.minimum(np.floor(src).astype(np.int64), n_in - 1)
    i1 = np.minimum(i0 + 1, n_in - 1)
    w1 = (src - i0).astype(np.float32)
    a = np.zeros((n_out, n_in), dtype=np.float32)
    a[np.arange(n_out), i0] += 1.0 - w1
    a[np.arange(n_out), i1] += w1
    return a


def _fused_conv_upsample_kernel(w_ref, b_ref, ah_ref, awt_ref, x0_ref, x1_ref, o_ref,
                                *, scale):
    """One output depth plane per grid step.

    x0_ref / x1_ref: bracketing input depth planes, (1, Cin, 1, H, W).
    o_ref: (1, Cout, 1, H*scale, W*scale).
    """
    cin = x0_ref.shape[1]
    cout = o_ref.shape[1]
    do = pl.program_id(1)

    # Depth interpolation weights (align_corners=False).  The integer d0 below uses
    # exactly the same formula as the x0/x1 index_maps, so the fetched planes and the
    # lerp weights always agree (no float-floor mismatch).
    d0 = jnp.maximum((2 * do + 1 - scale) // (2 * scale), 0)
    src = jnp.maximum((do.astype(jnp.float32) + 0.5) / scale - 0.5, 0.0)
    wd1 = jnp.clip(src - d0.astype(jnp.float32), 0.0, 1.0)
    wd0 = 1.0 - wd1

    # Depth lerp + 1x1x1 channel mix on the VPU (each input plane read once,
    # input-channel loop outer, Cout accumulators).
    accs = [None] * cout
    for c in range(cin):
        xc = (x0_ref[0, c, 0].astype(jnp.float32) * wd0
              + x1_ref[0, c, 0].astype(jnp.float32) * wd1)          # (H, W)
        for o in range(cout):
            t = xc * w_ref[o, c]
            accs[o] = t if accs[o] is None else accs[o] + t

    # Separable H/W interpolation as two small MXU matmuls per output channel.
    ah = ah_ref[...]      # (H_out, H)
    awt = awt_ref[...]    # (W, W_out)
    for o in range(cout):
        zo = accs[o] + b_ref[o]                                      # (H, W)
        tw = jnp.dot(zo, awt, preferred_element_type=jnp.float32)     # (H, W_out)
        o_ref[0, o, 0] = jnp.dot(
            ah, tw, preferred_element_type=jnp.float32).astype(o_ref.dtype)


def conv3d_1x1_upsample_pallas(x, weight, bias, scale):
    N, Cin, D, H, W = x.shape
    Cout = weight.shape[0]
    Do, Ho, Wo = D * scale, H * scale, W * scale

    w_f32 = weight.reshape(Cout, Cin).astype(jnp.float32)
    b_f32 = bias.astype(jnp.float32)
    ah = jnp.asarray(_interp_matrix(H, scale))        # (Ho, H)
    awt = jnp.asarray(_interp_matrix(W, scale).T)     # (W, Wo)

    def _d0(do):
        return jnp.maximum((2 * do + 1 - scale) // (2 * scale), 0)

    def x0_map(n, do):
        return (n, 0, _d0(do), 0, 0)

    def x1_map(n, do):
        return (n, 0, jnp.minimum(_d0(do) + 1, D - 1), 0, 0)

    itemsize = x.dtype.itemsize
    cost = pl.CostEstimate(
        flops=int(N * (4 * Cin * D * H * W
                       + 2 * Cin * Cout * D * H * W
                       + 2 * Cout * Do * (H * W * Wo + Ho * H * Wo))),
        transcendentals=0,
        bytes_accessed=int((2 * N * Cin * D * H * W
                            + N * Cout * Do * Ho * Wo) * itemsize),
    )
    blk_bytes = (2 * Cin * H * W + Cout * Ho * Wo) * itemsize + (Ho * H + W * Wo) * 4

    out = pl.pallas_call(
        functools.partial(_fused_conv_upsample_kernel, scale=scale),
        out_shape=jax.ShapeDtypeStruct((N, Cout, Do, Ho, Wo), x.dtype),
        grid_spec=pltpu.PrefetchScalarGridSpec(
            num_scalar_prefetch=0,
            grid=(N, Do),
            in_specs=[
                pl.BlockSpec(memory_space=pltpu.MemorySpace.SMEM),   # weight (Cout,Cin)
                pl.BlockSpec(memory_space=pltpu.MemorySpace.SMEM),   # bias   (Cout,)
                pl.BlockSpec((Ho, H), lambda n, do: (0, 0)),         # Ah
                pl.BlockSpec((W, Wo), lambda n, do: (0, 0)),         # Aw^T
                pl.BlockSpec((1, Cin, 1, H, W), x0_map),             # input plane d0
                pl.BlockSpec((1, Cin, 1, H, W), x1_map),             # input plane d1
            ],
            out_specs=pl.BlockSpec((1, Cout, 1, Ho, Wo),
                                   lambda n, do: (n, 0, do, 0, 0)),
        ),
        compiler_params=pltpu.CompilerParams(
            dimension_semantics=("parallel", "parallel"),
            vmem_limit_bytes=_vmem_limit(blk_bytes),
        ),
        cost_estimate=cost,
    )(w_f32, b_f32, ah, awt, x, x)
    return out


# ---------------------------------------------------------------------------
# Module forward
# ---------------------------------------------------------------------------

def segmentation_head_3d(x, weight, bias, scale_factor=1):
    """Forward pass of SegmentationHead3D (NCDHW, PyTorch semantics)."""
    Cout, Cin = weight.shape[0], weight.shape[1]
    w2 = weight.reshape(Cout, Cin)   # accept (Cout, Cin, 1, 1, 1) or (Cout, Cin)
    if scale_factor is None or scale_factor <= 1:
        return conv3d_1x1_pallas(x, w2, bias)
    s = int(scale_factor)
    if s != scale_factor:
        # TODO(synk): non-integer scale_factor trilinear upsample is not fused here.
        raise NotImplementedError("only integer scale_factor is supported")
    return conv3d_1x1_upsample_pallas(x, w2, bias, s)


# ---------------------------------------------------------------------------
# Self-test
# ---------------------------------------------------------------------------

if __name__ == "__main__":
    key = jax.random.PRNGKey(0)
    kx1, kx2, kx3, kw, kb = jax.random.split(key, 5)

    N, Cin, Cout = 2, 4, 3
    weight = jax.random.normal(kw, (Cout, Cin, 1, 1, 1), dtype=jnp.float32) * 0.1
    bias = jax.random.normal(kb, (Cout,), dtype=jnp.float32) * 0.1
    w2 = weight.reshape(Cout, Cin)

    head = jax.jit(segmentation_head_3d, static_argnames=("scale_factor",))

    def conv_ref(xx):
        return (jnp.einsum("ncdhw,oc->nodhw", xx, w2)
                + bias[None, :, None, None, None])

    def upsample_ref(y, s):
        def axis(n_in):
            dst = jnp.arange(n_in * s, dtype=jnp.float32)
            src = jnp.maximum((dst + 0.5) / s - 0.5, 0.0)
            i0 = jnp.clip(jnp.floor(src).astype(jnp.int32), 0, n_in - 1)
            i1 = jnp.minimum(i0 + 1, n_in - 1)
            return i0, i1, src - i0.astype(jnp.float32)

        _, _, D, H, W = y.shape
        d0, d1, wd = axis(D)
        h0, h1, wh = axis(H)
        w0, w1, ww = axis(W)
        y = (jnp.take(y, d0, axis=2) * (1 - wd)[:, None, None]
             + jnp.take(y, d1, axis=2) * wd[:, None, None])
        y = (jnp.take(y, h0, axis=3) * (1 - wh)[:, None]
             + jnp.take(y, h1, axis=3) * wh[:, None])
        y = jnp.take(y, w0, axis=4) * (1 - ww) + jnp.take(y, w1, axis=4) * ww
        return y

    # 1) scale_factor=1, 128-aligned spatial size (zero-copy dense path)
    x1 = jax.random.normal(kx1, (N, Cin, 16, 16, 16), dtype=jnp.float32)
    y1 = jax.block_until_ready(head(x1, weight, bias, scale_factor=1))
    assert y1.shape == (N, Cout, 16, 16, 16)
    assert jnp.allclose(y1, conv_ref(x1), atol=1e-5, rtol=1e-5)

    # 2) scale_factor=1, ragged spatial size (masked-tail path, no host pad/slice)
    x2 = jax.random.normal(kx2, (N, Cin, 3, 5, 7), dtype=jnp.float32)
    y2 = jax.block_until_ready(head(x2, weight, bias, scale_factor=1))
    assert y2.shape == (N, Cout, 3, 5, 7)
    assert jnp.allclose(y2, conv_ref(x2), atol=1e-5, rtol=1e-5)

    # 3) scale_factor=2: fused conv + trilinear upsample (align_corners=False)
    x3 = jax.random.normal(kx3, (N, Cin, 8, 8, 8), dtype=jnp.float32)
    y3 = jax.block_until_ready(head(x3, weight, bias, scale_factor=2))
    ref3 = upsample_ref(conv_ref(x3), 2)
    assert y3.shape == (N, Cout, 16, 16, 16)
    # The H/W interpolation matmuls may run at reduced internal MXU precision for f32.
    assert jnp.allclose(y3, ref3, atol=2e-2, rtol=2e-2)

    print("KERNEL_OK")
</pallas_src>

<mosaic_0001>
module attributes {stable_mosaic.version = 11 : i64} {
  func.func @_conv_kernel_dense(%arg0: i32, %arg1: i32, %arg2: memref<3x4xf32, #tpu.memory_space<smem>>, %arg3: memref<3xf32, #tpu.memory_space<smem>>, %arg4: memref<1x4x8x128xf32, #tpu.memory_space<vmem>>, %arg5: memref<1x3x8x128xf32, #tpu.memory_space<vmem>>) attributes {dimension_semantics = [#tpu.dimension_semantics<parallel>, #tpu.dimension_semantics<parallel>], iteration_bounds = array<i64: 2, 4>, scalar_prefetch = 0 : i64, scratch_operands = 0 : i64, tpu.core_type = #tpu.core_type<tc>, window_params = [{transform_indices = @transform_0, window_bounds = array<i64: 3, 4>}, {transform_indices = @transform_1, window_bounds = array<i64: 3>}, {transform_indices = @transform_2, window_bounds = array<i64: 1, 4, 8, 128>}, {transform_indices = @transform_3, window_bounds = array<i64: 1, 3, 8, 128>}]} {
    %c0 = arith.constant 0 : index
    %c0_0 = arith.constant 0 : index
    %c0_1 = arith.constant 0 : index
    %c0_2 = arith.constant 0 : index
    %0 = vector.load %arg4[%c0, %c0_0, %c0_1, %c0_2] : memref<1x4x8x128xf32, #tpu.memory_space<vmem>>, vector<1x1x8x128xf32>
    %1 = vector.shape_cast %0 : vector<1x1x8x128xf32> to vector<8x128xf32>
    %c0_3 = arith.constant 0 : index
    %c0_4 = arith.constant 0 : index
    %2 = memref.load %arg2[%c0_3, %c0_4] : memref<3x4xf32, #tpu.memory_space<smem>>
    %3 = vector.broadcast %2 : f32 to vector<8x128xf32>
    %4 = arith.mulf %1, %3 : vector<8x128xf32>
    %c1 = arith.constant 1 : index
    %c0_5 = arith.constant 0 : index
    %5 = memref.load %arg2[%c1, %c0_5] : memref<3x4xf32, #tpu.memory_space<smem>>
    %6 = vector.broadcast %5 : f32 to vector<8x128xf32>
    %7 = arith.mulf %1, %6 : vector<8x128xf32>
    %c2 = arith.constant 2 : index
    %c0_6 = arith.constant 0 : index
    %8 = memref.load %arg2[%c2, %c0_6] : memref<3x4xf32, #tpu.memory_space<smem>>
    %9 = vector.broadcast %8 : f32 to vector<8x128xf32>
    %10 = arith.mulf %1, %9 : vector<8x128xf32>
    %c0_7 = arith.constant 0 : index
    %c1_8 = arith.constant 1 : index
    %c0_9 = arith.constant 0 : index
    %c0_10 = arith.constant 0 : index
    %11 = vector.load %arg4[%c0_7, %c1_8, %c0_9, %c0_10] : memref<1x4x8x128xf32, #tpu.memory_space<vmem>>, vector<1x1x8x128xf32>
    %12 = vector.shape_cast %11 : vector<1x1x8x128xf32> to vector<8x128xf32>
    %c0_11 = arith.constant 0 : index
    %c1_12 = arith.constant 1 : index
    %13 = memref.load %arg2[%c0_11, %c1_12] : memref<3x4xf32, #tpu.memory_space<smem>>
    %14 = vector.broadcast %13 : f32 to vector<8x128xf32>
    %15 = arith.mulf %12, %14 : vector<8x128xf32>
    %16 = arith.addf %4, %15 : vector<8x128xf32>
    %c1_13 = arith.constant 1 : index
    %c1_14 = arith.constant 1 : index
    %17 = memref.load %arg2[%c1_13, %c1_14] : memref<3x4xf32, #tpu.memory_space<smem>>
    %18 = vector.broadcast %17 : f32 to vector<8x128xf32>
    %19 = arith.mulf %12, %18 : vector<8x128xf32>
    %20 = arith.addf %7, %19 : vector<8x128xf32>
    %c2_15 = arith.constant 2 : index
    %c1_16 = arith.constant 1 : index
    %21 = memref.load %arg2[%c2_15, %c1_16] : memref<3x4xf32, #tpu.memory_space<smem>>
    %22 = vector.broadcast %21 : f32 to vector<8x128xf32>
    %23 = arith.mulf %12, %22 : vector<8x128xf32>
    %24 = arith.addf %10, %23 : vector<8x128xf32>
    %c0_17 = arith.constant 0 : index
    %c2_18 = arith.constant 2 : index
    %c0_19 = arith.constant 0 : index
    %c0_20 = arith.constant 0 : index
    %25 = vector.load %arg4[%c0_17, %c2_18, %c0_19, %c0_20] : memref<1x4x8x128xf32, #tpu.memory_space<vmem>>, vector<1x1x8x128xf32>
    %26 = vector.shape_cast %25 : vector<1x1x8x128xf32> to vector<8x128xf32>
    %c0_21 = arith.constant 0 : index
    %c2_22 = arith.constant 2 : index
    %27 = memref.load %arg2[%c0_21, %c2_22] : memref<3x4xf32, #tpu.memory_space<smem>>
    %28 = vector.broadcast %27 : f32 to vector<8x128xf32>
    %29 = arith.mulf %26, %28 : vector<8x128xf32>
    %30 = arith.addf %16, %29 : vector<8x128xf32>
    %c1_23 = arith.constant 1 : index
    %c2_24 = arith.constant 2 : index
    %31 = memref.load %arg2[%c1_23, %c2_24] : memref<3x4xf32, #tpu.memory_space<smem>>
    %32 = vector.broadcast %31 : f32 to vector<8x128xf32>
    %33 = arith.mulf %26, %32 : vector<8x128xf32>
    %34 = arith.addf %20, %33 : vector<8x128xf32>
    %c2_25 = arith.constant 2 : index
    %c2_26 = arith.constant 2 : index
    %35 = memref.load %arg2[%c2_25, %c2_26] : memref<3x4xf32, #tpu.memory_space<smem>>
    %36 = vector.broadcast %35 : f32 to vector<8x128xf32>
    %37 = arith.mulf %26, %36 : vector<8x128xf32>
    %38 = arith.addf %24, %37 : vector<8x128xf32>
    %c0_27 = arith.constant 0 : index
    %c3 = arith.constant 3 : index
    %c0_28 = arith.constant 0 : index
    %c0_29 = arith.constant 0 : index
    %39 = vector.load %arg4[%c0_27, %c3, %c0_28, %c0_29] : memref<1x4x8x128xf32, #tpu.memory_space<vmem>>, vector<1x1x8x128xf32>
    %40 = vector.shape_cast %39 : vector<1x1x8x128xf32> to vector<8x128xf32>
    %c0_30 = arith.constant 0 : index
    %c3_31 = arith.constant 3 : index
    %41 = memref.load %arg2[%c0_30, %c3_31] : memref<3x4xf32, #tpu.memory_space<smem>>
    %42 = vector.broadcast %41 : f32 to vector<8x128xf32>
    %43 = arith.mulf %40, %42 : vector<8x128xf32>
    %44 = arith.addf %30, %43 : vector<8x128xf32>
    %c1_32 = arith.constant 1 : index
    %c3_33 = arith.constant 3 : index
    %45 = memref.load %arg2[%c1_32, %c3_33] : memref<3x4xf32, #tpu.memory_space<smem>>
    %46 = vector.broadcast %45 : f32 to vector<8x128xf32>
    %47 = arith.mulf %40, %46 : vector<8x128xf32>
    %48 = arith.addf %34, %47 : vector<8x128xf32>
    %c2_34 = arith.constant 2 : index
    %c3_35 = arith.constant 3 : index
    %49 = memref.load %arg2[%c2_34, %c3_35] : memref<3x4xf32, #tpu.memory_space<smem>>
    %50 = vector.broadcast %49 : f32 to vector<8x128xf32>
    %51 = arith.mulf %40, %50 : vector<8x128xf32>
    %52 = arith.addf %38, %51 : vector<8x128xf32>
    %c0_36 = arith.constant 0 : index
    %53 = memref.load %arg3[%c0_36] : memref<3xf32, #tpu.memory_space<smem>>
    %54 = vector.broadcast %53 : f32 to vector<8x128xf32>
    %55 = arith.addf %44, %54 : vector<8x128xf32>
    %c0_37 = arith.constant 0 : index
    %c0_38 = arith.constant 0 : index
    %c0_39 = arith.constant 0 : index
    %c0_40 = arith.constant 0 : index
    %56 = vector.load %arg5[%c0_37, %c0_38, %c0_39, %c0_40] : memref<1x3x8x128xf32, #tpu.memory_space<vmem>>, vector<1x1x8x128xf32>
    %57 = vector.shape_cast %56 : vector<1x1x8x128xf32> to vector<8x128xf32>
    %58 = vector.shape_cast %55 : vector<8x128xf32> to vector<1x1x8x128xf32>
    tpu.vector_store %arg5[%c0_37, %c0_38, %c0_39, %c0_40], %58 {strides = array<i32>} : memref<1x3x8x128xf32, #tpu.memory_space<vmem>>, vector<1x1x8x128xf32>,
    %c1_41 = arith.constant 1 : index
    %59 = memref.load %arg3[%c1_41] : memref<3xf32, #tpu.memory_space<smem>>
    %60 = vector.broadcast %59 : f32 to vector<8x128xf32>
    %61 = arith.addf %48, %60 : vector<8x128xf32>
    %c0_42 = arith.constant 0 : index
    %c1_43 = arith.constant 1 : index
    %c0_44 = arith.constant 0 : index
    %c0_45 = arith.constant 0 : index
    %62 = vector.load %arg5[%c0_42, %c1_43, %c0_44, %c0_45] : memref<1x3x8x128xf32, #tpu.memory_space<vmem>>, vector<1x1x8x128xf32>
    %63 = vector.shape_cast %62 : vector<1x1x8x128xf32> to vector<8x128xf32>
    %64 = vector.shape_cast %61 : vector<8x128xf32> to vector<1x1x8x128xf32>
    tpu.vector_store %arg5[%c0_42, %c1_43, %c0_44, %c0_45], %64 {strides = array<i32>} : memref<1x3x8x128xf32, #tpu.memory_space<vmem>>, vector<1x1x8x128xf32>,
    %c2_46 = arith.constant 2 : index
    %65 = memref.load %arg3[%c2_46] : memref<3xf32, #tpu.memory_space<smem>>
    %66 = vector.broadcast %65 : f32 to vector<8x128xf32>
    %67 = arith.addf %52, %66 : vector<8x128xf32>
    %c0_47 = arith.constant 0 : index
    %c2_48 = arith.constant 2 : index
    %c0_49 = arith.constant 0 : index
    %c0_50 = arith.constant 0 : index
    %68 = vector.load %arg5[%c0_47, %c2_48, %c0_49, %c0_50] : memref<1x3x8x128xf32, #tpu.memory_space<vmem>>, vector<1x1x8x128xf32>
    %69 = vector.shape_cast %68 : vector<1x1x8x128xf32> to vector<8x128xf32>
    %70 = vector.shape_cast %67 : vector<8x128xf32> to vector<1x1x8x128xf32>
    tpu.vector_store %arg5[%c0_47, %c2_48, %c0_49, %c0_50], %70 {strides = array<i32>} : memref<1x3x8x128xf32, #tpu.memory_space<vmem>>, vector<1x1x8x128xf32>,
    return
  }
  func.func @transform_0(%arg0: i32, %arg1: i32) -> (i32, i32) {
    %c0_i32 = arith.constant 0 : i32
    %c0_i32_0 = arith.constant 0 : i32
    %c0_i32_1 = arith.constant 0 : i32
    return %c0_i32, %c0_i32_0 : i32, i32
  }
  func.func @transform_1(%arg0: i32, %arg1: i32) -> i32 {
    %c0_i32 = arith.constant 0 : i32
    %c0_i32_0 = arith.constant 0 : i32
    return %c0_i32 : i32
  }
  func.func @transform_2(%arg0: i32, %arg1: i32) -> (i32, i32, i32, i32) {
    %c0_i32 = arith.constant 0 : i32
    %c0_i32_0 = arith.constant 0 : i32
    %c0_i32_1 = arith.constant 0 : i32
    return %arg0, %c0_i32, %arg1, %c0_i32_0 : i32, i32, i32, i32
  }
  func.func @transform_3(%arg0: i32, %arg1: i32) -> (i32, i32, i32, i32) {
    %c0_i32 = arith.constant 0 : i32
    %c0_i32_0 = arith.constant 0 : i32
    %c0_i32_1 = arith.constant 0 : i32
    return %arg0, %c0_i32, %arg1, %c0_i32_0 : i32, i32, i32, i32
  }
}

</mosaic_0001>

<llo_original>
// kernel: segmentation_head_3d.1
$region0: #{segmentation_head_3d.1}
  #allocation0 [shape = 'u32[]', space=smem, size = 0x4, offset = 0x4, fixed_abs, tag = 'smem constant byte address 0x4 - core index']
  #allocation1 [shape = 'u32[144,128]{1,0:T(1,128)}', space=vmem, size = 0x12000, scoped, tag = 'internal scratch']
  %s0 = inlined_call_operand.vmem [shape: f32[3,4], index: 0, kind: input, shape index: {}]
  %s1 = inlined_call_operand.vmem [shape: f32[3], index: 1, kind: input, shape index: {}]
  %s2 = inlined_call_operand.vmem [shape: f32[2,4,32,128], index: 2, kind: input, shape index: {}]
  %s3 = inlined_call_operand.vmem [shape: f32[2,3,32,128], index: 3, kind: output, shape index: {}]
  %s4 = sld [smem:[#allocation0]]
  $region125: #{segmentation_head_3d.1} parent=0
    _
  %s6 = ssub.s32 1, %s4
  %s7 = scalar_select 0, %s6, %s4
  $region1: #{segmentation_head_3d.1} parent=0
    #allocation2 [shape = 'u8[2048]{0}', space=smem, size = 0x800, scoped, tag = 'input window, operand 0, single buffered']
    #allocation3 [shape = 's32[2]{0}', space=sflag, size = 0x8, scoped, tag = 'scoped memory for segmentation_head_3d.1']
    #allocation4 [shape = 'u8[512]{0}', space=smem, size = 0x200, scoped, tag = 'input window, operand 1, single buffered']
    #allocation5 [shape = 's32[1]{0}', space=sflag, size = 0x4, scoped, tag = 'scoped memory for segmentation_head_3d.1']
    #allocation6 [shape = 'u8[32768]{0}', space=vmem, size = 0x8000, scoped, tag = 'input window, operand 2']
    #allocation7 [shape = 'u8[24576]{0}', space=vmem, size = 0x6000, scoped, tag = 'output window, operand 0']
    %8 = vsyncpa [#allocation3], 0
    %9 = vsyncpa [#allocation5], 0
    loop: start=0, step=1, limit=10
    $region2: #{segmentation_head_3d.1} parent=1 // loop_pre_header
      _
    $region3: #{segmentation_head_3d.1} parent=1 // loop_header
      %s11 = sphi 0, %s15
      %p12 = scmp.ge.s32.totalorder %s11, 10
      %s18 = sphi 0, %s30
      %s19 = sphi 0, %s26
      %s20 = sphi 0, %s18
      %s21 = sphi 0, %s19
      %s22 = sphi 0, %s20
      %s23 = sphi 0, %s21
      %s31 = sphi 0, %s31
      %s33 = sphi 0, %s31
      %s34 = sphi 0, %s33
      %s48 = sphi 0, %s34
      %s52 = sphi 0, %s52
      %s54 = sphi 0, %s52
      %s55 = sphi 0, %s54
      %s69 = sphi 0, %s55
      %s77 = sphi 0, %s79
      %s80 = sphi 0, %s77
      %s81 = sphi 0, %s80
      %s97 = sphi 0, %s81
      %s105 = sphi 0, %s107
      %s108 = sphi 0, %s105
      %s109 = sphi 0, %s108
      %s125 = sphi 0, %s109
    $region4: #{segmentation_head_3d.1} parent=1 // loop_header_branch
      %14 = sbr.rel (%p12) target = $region8
    $region5: #{segmentation_head_3d.1} parent=1 // loop_body
      %s16 = ssub.s32 %s11, 1
      %s17 = ssub.s32 %s11, 2
      %s24 = sadd.s32 1, %s19
      %p25 = scmp.ge.s32.totalorder %s24, 4
      %s26 = scalar_select %p25, 0, %s24
      %s27 = sadd.s32 1, %s18
      %s28 = scalar_select %p25, %s27, %s18
      %p29 = scmp.ge.s32.totalorder %s28, 2
      %s30 = scalar_select %p29, 0, %s28
      %s32 = sadd.s32 %s31, 1
      %p35 = scmp.eq.s32.totalorder %s11, 7
      %p36 = scmp.ne.s32.totalorder %s31, %s33
      %p37 = scmp.eq.s32.totalorder %s11, 0
      %p38 = por %p36, %p37
      %p39 = scmp.ne.s32.totalorder %s31, %s33
      %p40 = scmp.eq.s32.totalorder %s16, 7
      %p41 = por %p39, %p40
      %p42 = scmp.ne.s32.totalorder %s33, %s34
      %p43 = scmp.eq.s32.totalorder %s16, 0
      %p44 = por %p42, %p43
      %p45 = scmp.ne.s32.totalorder %s33, %s34
      %p46 = scmp.eq.s32.totalorder %s17, 7
      %p47 = por %p45, %p46
      %p49 = scmp.ne.s32.totalorder %s34, %s48
      %p50 = scmp.eq.s32.totalorder %s17, 0
      %p51 = por %p49, %p50
      %s53 = sadd.s32 %s52, 1
      %p56 = scmp.eq.s32.totalorder %s11, 7
      %p57 = scmp.ne.s32.totalorder %s52, %s54
      %p58 = scmp.eq.s32.totalorder %s11, 0
      %p59 = por %p57, %p58
      %p60 = scmp.ne.s32.totalorder %s52, %s54
      %p61 = scmp.eq.s32.totalorder %s16, 7
      %p62 = por %p60, %p61
      %p63 = scmp.ne.s32.totalorder %s54, %s55
      %p64 = scmp.eq.s32.totalorder %s16, 0
      %p65 = por %p63, %p64
      %p66 = scmp.ne.s32.totalorder %s54, %s55
      %p67 = scmp.eq.s32.totalorder %s17, 7
      %p68 = por %p66, %p67
      %p70 = scmp.ne.s32.totalorder %s55, %s69
      %p71 = scmp.eq.s32.totalorder %s17, 0
      %p72 = por %p70, %p71
      %s73 = ssub.s32 %s18, %s30
      %s74 = ssub.s32 %s19, %s26
      %s75 = sor.u32 %s73, %s74
      %p76 = scmp.eq.s32.totalorder %s75, 0
      %s78 = sadd.s32 %s77, 1
      %s79 = scalar_select %p76, %s77, %s78
      %p82 = pneg %p76
      %p83 = scmp.eq.s32.totalorder %s11, 7
      %p84 = por %p82, %p83
      %p85 = scmp.ne.s32.totalorder %s77, %s80
      %p86 = scmp.eq.s32.totalorder %s11, 0
      %p87 = por %p85, %p86
      %p88 = scmp.ne.s32.totalorder %s77, %s80
      %p89 = scmp.eq.s32.totalorder %s16, 7
      %p90 = por %p88, %p89
      %p91 = scmp.ne.s32.totalorder %s80, %s81
      %p92 = scmp.eq.s32.totalorder %s16, 0
      %p93 = por %p91, %p92
      %p94 = scmp.ne.s32.totalorder %s80, %s81
      %p95 = scmp.eq.s32.totalorder %s17, 7
      %p96 = por %p94, %p95
      %p98 = scmp.ne.s32.totalorder %s81, %s97
      %p99 = scmp.eq.s32.totalorder %s17, 0
      %p100 = por %p98, %p99
      %s101 = ssub.s32 %s18, %s30
      %s102 = ssub.s32 %s19, %s26
      %s103 = sor.u32 %s101, %s102
      %p104 = scmp.eq.s32.totalorder %s103, 0
      %s106 = sadd.s32 %s105, 1
      %s107 = scalar_select %p104, %s105, %s106
      %p110 = pneg %p104
      %p111 = scmp.eq.s32.totalorder %s11, 7
      %p112 = por %p110, %p111
      %p113 = scmp.ne.s32.totalorder %s105, %s108
      %p114 = scmp.eq.s32.totalorder %s11, 0
      %p115 = por %p113, %p114
      %p116 = scmp.ne.s32.totalorder %s105, %s108
      %p117 = scmp.eq.s32.totalorder %s16, 7
      %p118 = por %p116, %p117
      %p119 = scmp.ne.s32.totalorder %s108, %s109
      %p120 = scmp.eq.s32.totalorder %s16, 0
      %p121 = por %p119, %p120
      %p122 = scmp.ne.s32.totalorder %s108, %s109
      %p123 = scmp.eq.s32.totalorder %s17, 7
      %p124 = por %p122, %p123
      %p126 = scmp.ne.s32.totalorder %s109, %s125
      %p127 = scmp.eq.s32.totalorder %s17, 0
      %p128 = por %p126, %p127
      %p129 = scmp.le.s32.totalorder 1, %s11
      %p130 = scmp.lt.s32.totalorder %s11, 9
      %p131 = pnand %p129, %p130
      %p132 = pneg %p131
      // Predicated region
      $region9: #{segmentation_head_3d.1} parent=5 // pred_check
        _
      $region10: #{segmentation_head_3d.1} parent=5 // pred_check_branch
        %134 = sbr.rel (%p131) target = $region12
      $region11: #{segmentation_head_3d.1} parent=5 // pred_region
        %s135 = ssub.s32 %s11, 1
        // Predicated region
        $region13: #{segmentation_head_3d.1} parent=11 // pred_check
          %p136 = pneg %p44
        $region14: #{segmentation_head_3d.1} parent=11 // pred_check_branch
          %138 = sbr.rel (%p136) target = $region16
        $region15: #{segmentation_head_3d.1} parent=11 // pred_region
          %s140 = ssub.s32 64, 64
          %141 = vsyncadd [#allocation3], %s140
          %s143 = sshll.u32 %s0, 4
          %s144 = int_to_ptr.vmem [resolvable:$true] %s143
          %146 = dma.vmem_to_smem %s144, 64, [#allocation2], [#allocation3]
        $region16: #{segmentation_head_3d.1} parent=11 // pred_fallthru
          _
        // Predicated region
        $region17: #{segmentation_head_3d.1} parent=11 // pred_check
          %p147 = pneg %p65
        $region18: #{segmentation_head_3d.1} parent=11 // pred_check_branch
          %149 = sbr.rel (%p147) target = $region20
        $region19: #{segmentation_head_3d.1} parent=11 // pred_region
          %s151 = ssub.s32 16, 16
          %152 = vsyncadd [#allocation5], %s151
          %s154 = sshll.u32 %s1, 4
          %s155 = int_to_ptr.vmem [resolvable:$true] %s154
          %157 = dma.vmem_to_smem %s155, 16, [#allocation4], [#allocation5]
        $region20: #{segmentation_head_3d.1} parent=11 // pred_fallthru
          _
      $region12: #{segmentation_head_3d.1} parent=5 // pred_fallthru
        _
      %p158 = scmp.lt.s32.totalorder %s11, 8
      // Predicated region
      $region21: #{segmentation_head_3d.1} parent=5 // pred_check
        %p159 = pneg %p158
      $region22: #{segmentation_head_3d.1} parent=5 // pred_check_branch
        %161 = sbr.rel (%p159) target = $region24
      $region23: #{segmentation_head_3d.1} parent=5 // pred_region
        // Predicated region
        $region25: #{segmentation_head_3d.1} parent=23 // pred_check
          %p162 = pneg %p87
        $region26: #{segmentation_head_3d.1} parent=23 // pred_check_branch
          %164 = sbr.rel (%p162) target = $region28
        $region27: #{segmentation_head_3d.1} parent=23 // pred_region
          %s165 = sand.u32 %s77, 1
          %s166 = sand.u32 %s77, 1
          %s167 = smul.addr %s166, 32
          %s168 = scalar_lea.vmem [#allocation6], %s167
          %s169 = smul.addr %s18, 16
          %s170 = sadd.s32 %s19, %s169
          %s171 = smul.addr %s170, 8
          %s172 = scalar_lea.vmem %s2, %s171
          // Predicated region
          $region29: #{segmentation_head_3d.1} parent=27 // pred_check
            _
          $region30: #{segmentation_head_3d.1} parent=27 // pred_check_branch
            %174 = sbr.rel (0) target = $region32
          $region31: #{segmentation_head_3d.1} parent=27 // pred_region
            // Predicated region
            $region33: #{segmentation_head_3d.1} parent=31 // pred_check
              _
            $region34: #{segmentation_head_3d.1} parent=31 // pred_check_branch
              %176 = sbr.rel (0) target = $region36
            $region35: #{segmentation_head_3d.1} parent=31 // pred_region
              // Predicated region
              $region48: #{segmentation_head_3d.1} parent=35 // pred_check
                _
              $region49: #{segmentation_head_3d.1} parent=35 // pred_check_branch
                %197 = sbr.rel (0) target = $region51
              $region50: #{segmentation_head_3d.1} parent=35 // pred_region
                loop: start=0, step=1, limit=1
                $region52: #{segmentation_head_3d.1} parent=50 // loop_pre_header
                  _
                $region53: #{segmentation_head_3d.1} parent=50 // loop_header
                  %s199 = sphi 0, %s203
                  %p200 = scmp.ge.s32.totalorder %s199, 1
                  %s204 = sphi %s172, %s172
                  %s205 = sphi %s168, %s168
                $region54: #{segmentation_head_3d.1} parent=50 // loop_header_branch
                  %202 = sbr.rel (%p200) target = $region58
                $region55: #{segmentation_head_3d.1} parent=50 // loop_body
                  %v206 = vld [vmem:[%s204] sm:$0xff]
                  %207 = vst [vmem:[%s205] sm:$0xff] %v206
                  %v208 = vld [vmem:[%s204 + $0x20] sm:$0xff]
                  %209 = vst [vmem:[%s205 + $0x8] sm:$0xff] %v208
                  %v210 = vld [vmem:[%s204 + $0x40] sm:$0xff]
                  %211 = vst [vmem:[%s205 + $0x10] sm:$0xff] %v210
                  %v212 = vld [vmem:[%s204 + $0x60] sm:$0xff]
                  %213 = vst [vmem:[%s205 + $0x18] sm:$0xff] %v212
                $region56: #{segmentation_head_3d.1} parent=50 // loop_footer
                  %s203 = sadd.s32 1, %s199
                $region57: #{segmentation_head_3d.1} parent=50 // loop_footer_branch
                  %198 = sbr.rel target = $region53
                $region58: #{segmentation_head_3d.1} parent=50 // loop_exit
                  _
              $region51: #{segmentation_head_3d.1} parent=35 // pred_fallthru
                _
              // Predicated region
              $region59: #{segmentation_head_3d.1} parent=35 // pred_check
                _
              $region60: #{segmentation_head_3d.1} parent=35 // pred_check_branch
                %215 = sbr.rel target = $region62
              $region61: #{segmentation_head_3d.1} parent=35 // pred_region
                _
              $region62: #{segmentation_head_3d.1} parent=35 // pred_fallthru
                _
            $region36: #{segmentation_head_3d.1} parent=31 // pred_fallthru
              _
            // Predicated region
            $region37: #{segmentation_head_3d.1} parent=31 // pred_check
              _
            $region38: #{segmentation_head_3d.1} parent=31 // pred_check_branch
              %178 = sbr.rel target = $region40
            $region39: #{segmentation_head_3d.1} parent=31 // pred_region
              loop: start=0, step=1, limit=1
              $region41: #{segmentation_head_3d.1} parent=39 // loop_pre_header
                _
              $region42: #{segmentation_head_3d.1} parent=39 // loop_header
                %s181 = sphi 0, %s185
                %p182 = scmp.ge.s32.totalorder %s181, 1
                %s186 = sphi %s172, %s172
                %s187 = sphi %s168, %s168
              $region43: #{segmentation_head_3d.1} parent=39 // loop_header_branch
                %184 = sbr.rel (%p182) target = $region47
              $region44: #{segmentation_head_3d.1} parent=39 // loop_body
                %v188 = vld [vmem:[%s186] sm:$0xff]
                %189 = vst [vmem:[%s187] sm:$0xff] %v188
                %v190 = vld [vmem:[%s186 + $0x20] sm:$0xff]
                %191 = vst [vmem:[%s187 + $0x8] sm:$0xff] %v190
                %v192 = vld [vmem:[%s186 + $0x40] sm:$0xff]
                %193 = vst [vmem:[%s187 + $0x10] sm:$0xff] %v192
                %v194 = vld [vmem:[%s186 + $0x60] sm:$0xff]
                %195 = vst [vmem:[%s187 + $0x18] sm:$0xff] %v194
              $region45: #{segmentation_head_3d.1} parent=39 // loop_footer
                %s185 = sadd.s32 1, %s181
              $region46: #{segmentation_head_3d.1} parent=39 // loop_footer_branch
                %180 = sbr.rel target = $region42
              $region47: #{segmentation_head_3d.1} parent=39 // loop_exit
                _
            $region40: #{segmentation_head_3d.1} parent=31 // pred_fallthru
              _
          $region32: #{segmentation_head_3d.1} parent=27 // pred_fallthru
            _
          %216 = vnop
        $region28: #{segmentation_head_3d.1} parent=23 // pred_fallthru
          _
      $region24: #{segmentation_head_3d.1} parent=5 // pred_fallthru
        _
      %p217 = scmp.le.s32.totalorder 1, %s11
      %p218 = scmp.lt.s32.totalorder %s11, 9
      %p219 = pnand %p217, %p218
      %p220 = pneg %p219
      // Predicated region
      $region63: #{segmentation_head_3d.1} parent=5 // pred_check
        _
      $region64: #{segmentation_head_3d.1} parent=5 // pred_check_branch
        %222 = sbr.rel (%p219) target = $region66
      $region65: #{segmentation_head_3d.1} parent=5 // pred_region
        %s223 = ssub.s32 %s11, 1
        // Predicated region
        $region67: #{segmentation_head_3d.1} parent=65 // pred_check
          %p224 = pneg %p44
        $region68: #{segmentation_head_3d.1} parent=65 // pred_check_branch
          %226 = sbr.rel (%p224) target = $region70
        $region69: #{segmentation_head_3d.1} parent=65 // pred_region
          %227 = dma.done [#allocation3], 64
        $region70: #{segmentation_head_3d.1} parent=65 // pred_fallthru
          _
        // Predicated region
        $region71: #{segmentation_head_3d.1} parent=65 // pred_check
          %p228 = pneg %p65
        $region72: #{segmentation_head_3d.1} parent=65 // pred_check_branch
          %230 = sbr.rel (%p228) target = $region74
        $region73: #{segmentation_head_3d.1} parent=65 // pred_region
          %231 = dma.done [#allocation5], 16
        $region74: #{segmentation_head_3d.1} parent=65 // pred_fallthru
          _
        %s232 = sand.u32 %s80, 1
        %s233 = sand.u32 %s80, 1
        %s234 = smul.addr %s233, 32
        %s235 = scalar_lea.vmem [#allocation6], %s234
        // Predicated region
        $region75: #{segmentation_head_3d.1} parent=65 // pred_check
          %p236 = pneg %p93
        $region76: #{segmentation_head_3d.1} parent=65 // pred_check_branch
          %238 = sbr.rel (%p236) target = $region78
        $region77: #{segmentation_head_3d.1} parent=65 // pred_region
          _
        $region78: #{segmentation_head_3d.1} parent=65 // pred_fallthru
          _
        %239 = sfence
        %p240 = pneg %p44
        %p241 = pneg %p41
        %p242 = pneg %p65
        %p243 = pneg %p62
        %s244 = sand.u32 %s80, 1
        %s245 = sand.u32 %s80, 1
        %s246 = smul.addr %s245, 32
        %s247 = scalar_lea.vmem [#allocation6], %s246
        %p248 = pneg %p93
        %p249 = pneg %p90
        %p250 = pneg %p121
        %p251 = pneg %p118
        %s252 = sand.u32 %s108, 1
        %s253 = sand.u32 %s108, 1
        %s254 = smul.addr %s253, 24
        %s255 = scalar_lea.vmem [#allocation7], %s254
        %v256 = vld [vmem:[%s235] sm:$0xff]
        %s257 = sld [smem:[#allocation2]]
        %v258 = vstv %s257
        %v259 = vmul.f32 %v256, %v258
        %s260 = sld [smem:[#allocation2 + $0x80]]
        %v261 = vstv %s260
        %v262 = vmul.f32 %v256, %v261
        %s263 = sld [smem:[#allocation2 + $0x100]]
        %v264 = vstv %s263
        %v265 = vmul.f32 %v256, %v264
        %s266 = scalar_lea.vmem %s235, 8 [#allocation6]
        %v267 = vld [vmem:[%s266] sm:$0xff]
        %s268 = sld [smem:[#allocation2 + $0x1]]
        %v269 = vstv %s268
        %v270 = vmul.f32 %v267, %v269
        %v271 = vadd.f32 %v259, %v270
        %s272 = sld [smem:[#allocation2 + $0x81]]
        %v273 = vstv %s272
        %v274 = vmul.f32 %v267, %v273
        %v275 = vadd.f32 %v262, %v274
        %s276 = sld [smem:[#allocation2 + $0x101]]
        %v277 = vstv %s276
        %v278 = vmul.f32 %v267, %v277
        %v279 = vadd.f32 %v265, %v278
        %s280 = scalar_lea.vmem %s235, 16 [#allocation6]
        %v281 = vld [vmem:[%s280] sm:$0xff]
        %s282 = sld [smem:[#allocation2 + $0x2]]
        %v283 = vstv %s282
        %v284 = vmul.f32 %v281, %v283
        %v285 = vadd.f32 %v271, %v284
        %s286 = sld [smem:[#allocation2 + $0x82]]
        %v287 = vstv %s286
        %v288 = vmul.f32 %v281, %v287
        %v289 = vadd.f32 %v275, %v288
        %s290 = sld [smem:[#allocation2 + $0x102]]
        %v291 = vstv %s290
        %v292 = vmul.f32 %v281, %v291
        %v293 = vadd.f32 %v279, %v292
        %s294 = scalar_lea.vmem %s235, 24 [#allocation6]
        %v295 = vld [vmem:[%s294] sm:$0xff]
        %s296 = sld [smem:[#allocation2 + $0x3]]
        %v297 = vstv %s296
        %v298 = vmul.f32 %v295, %v297
        %v299 = vadd.f32 %v285, %v298
        %s300 = sld [smem:[#allocation2 + $0x83]]
        %v301 = vstv %s300
        %v302 = vmul.f32 %v295, %v301
        %v303 = vadd.f32 %v289, %v302
        %s304 = sld [smem:[#allocation2 + $0x103]]
        %v305 = vstv %s304
        %v306 = vmul.f32 %v295, %v305
        %v307 = vadd.f32 %v293, %v306
        %s308 = sld [smem:[#allocation4]]
        %v309 = vstv %s308
        %v310 = vadd.f32 %v299, %v309
        %311 = vst [vmem:[%s255] sm:$0xff] %v310
        %s312 = sld [smem:[#allocation4 + $0x1]]
        %v313 = vstv %s312
        %v314 = vadd.f32 %v303, %v313
        %s315 = scalar_lea.vmem %s255, 8 [#allocation7]
        %316 = vst [vmem:[%s315] sm:$0xff] %v314
        %s317 = sld [smem:[#allocation4 + $0x2]]
        %v318 = vstv %s317
        %v319 = vadd.f32 %v307, %v318
        %s320 = scalar_lea.vmem %s255, 16 [#allocation7]
        %321 = vst [vmem:[%s320] sm:$0xff] %v319
        %s322 = sand.u32 %s108, 1
        %s323 = sand.u32 %s108, 1
        %s324 = smul.addr %s323, 24
        %s325 = scalar_lea.vmem [#allocation7], %s324
        // Predicated region
        $region79: #{segmentation_head_3d.1} parent=65 // pred_check
          %p326 = pneg %p118
        $region80: #{segmentation_head_3d.1} parent=65 // pred_check_branch
          %328 = sbr.rel (%p326) target = $region82
        $region81: #{segmentation_head_3d.1} parent=65 // pred_region
          %s329 = smul.addr %s20, 12
          %s330 = sadd.s32 %s21, %s329
          %s331 = smul.addr %s330, 8
          %s332 = scalar_lea.vmem %s3, %s331
          // Predicated region
          $region83: #{segmentation_head_3d.1} parent=81 // pred_check
            _
          $region84: #{segmentation_head_3d.1} parent=81 // pred_check_branch
            %334 = sbr.rel (0) target = $region86
          $region85: #{segmentation_head_3d.1} parent=81 // pred_region
            // Predicated region
            $region87: #{segmentation_head_3d.1} parent=85 // pred_check
              _
            $region88: #{segmentation_head_3d.1} parent=85 // pred_check_branch
              %336 = sbr.rel (0) target = $region90
            $region89: #{segmentation_head_3d.1} parent=85 // pred_region
              // Predicated region
              $region102: #{segmentation_head_3d.1} parent=89 // pred_check
                _
              $region103: #{segmentation_head_3d.1} parent=89 // pred_check_branch
                %355 = sbr.rel (0) target = $region105
              $region104: #{segmentation_head_3d.1} parent=89 // pred_region
                loop: start=0, step=1, limit=1
                $region106: #{segmentation_head_3d.1} parent=104 // loop_pre_header
                  _
                $region107: #{segmentation_head_3d.1} parent=104 // loop_header
                  %s357 = sphi 0, %s361
                  %p358 = scmp.ge.s32.totalorder %s357, 1
                  %s362 = sphi %s325, %s325
                  %s363 = sphi %s332, %s332
                $region108: #{segmentation_head_3d.1} parent=104 // loop_header_branch
                  %360 = sbr.rel (%p358) target = $region112
                $region109: #{segmentation_head_3d.1} parent=104 // loop_body
                  %v364 = vld [vmem:[%s362] sm:$0xff]
                  %365 = vst [vmem:[%s363] sm:$0xff] %v364
                  %v366 = vld [vmem:[%s362 + $0x8] sm:$0xff]
                  %367 = vst [vmem:[%s363 + $0x20] sm:$0xff] %v366
                  %v368 = vld [vmem:[%s362 + $0x10] sm:$0xff]
                  %369 = vst [vmem:[%s363 + $0x40] sm:$0xff] %v368
                $region110: #{segmentation_head_3d.1} parent=104 // loop_footer
                  %s361 = sadd.s32 1, %s357
                $region111: #{segmentation_head_3d.1} parent=104 // loop_footer_branch
                  %356 = sbr.rel target = $region107
                $region112: #{segmentation_head_3d.1} parent=104 // loop_exit
                  _
              $region105: #{segmentation_head_3d.1} parent=89 // pred_fallthru
                _
              // Predicated region
              $region113: #{segmentation_head_3d.1} parent=89 // pred_check
                _
              $region114: #{segmentation_head_3d.1} parent=89 // pred_check_branch
                %371 = sbr.rel target = $region116
              $region115: #{segmentation_head_3d.1} parent=89 // pred_region
                _
              $region116: #{segmentation_head_3d.1} parent=89 // pred_fallthru
                _
            $region90: #{segmentation_head_3d.1} parent=85 // pred_fallthru
              _
            // Predicated region
            $region91: #{segmentation_head_3d.1} parent=85 // pred_check
              _
            $region92: #{segmentation_head_3d.1} parent=85 // pred_check_branch
              %338 = sbr.rel target = $region94
            $region93: #{segmentation_head_3d.1} parent=85 // pred_region
              loop: start=0, step=1, limit=1
              $region95: #{segmentation_head_3d.1} parent=93 // loop_pre_header
                _
              $region96: #{segmentation_head_3d.1} parent=93 // loop_header
                %s341 = sphi 0, %s345
                %p342 = scmp.ge.s32.totalorder %s341, 1
                %s346 = sphi %s325, %s325
                %s347 = sphi %s332, %s332
              $region97: #{segmentation_head_3d.1} parent=93 // loop_header_branch
                %344 = sbr.rel (%p342) target = $region101
              $region98: #{segmentation_head_3d.1} parent=93 // loop_body
                %v348 = vld [vmem:[%s346] sm:$0xff]
                %349 = vst [vmem:[%s347] sm:$0xff] %v348
                %v350 = vld [vmem:[%s346 + $0x8] sm:$0xff]
                %351 = vst [vmem:[%s347 + $0x20] sm:$0xff] %v350
                %v352 = vld [vmem:[%s346 + $0x10] sm:$0xff]
                %353 = vst [vmem:[%s347 + $0x40] sm:$0xff] %v352
              $region99: #{segmentation_head_3d.1} parent=93 // loop_footer
                %s345 = sadd.s32 1, %s341
              $region100: #{segmentation_head_3d.1} parent=93 // loop_footer_branch
                %340 = sbr.rel target = $region96
              $region101: #{segmentation_head_3d.1} parent=93 // loop_exit
                _
            $region94: #{segmentation_head_3d.1} parent=85 // pred_fallthru
              _
          $region86: #{segmentation_head_3d.1} parent=81 // pred_fallthru
            _
          %372 = vnop
        $region82: #{segmentation_head_3d.1} parent=65 // pred_fallthru
          _
      $region66: #{segmentation_head_3d.1} parent=5 // pred_fallthru
        _
      %p373 = scmp.le.s32.totalorder 2, %s11
      // Predicated region
      $region117: #{segmentation_head_3d.1} parent=5 // pred_check
        %p374 = pneg %p373
      $region118: #{segmentation_head_3d.1} parent=5 // pred_check_branch
        %376 = sbr.rel (%p374) target = $region120
      $region119: #{segmentation_head_3d.1} parent=5 // pred_region
        %s377 = ssub.s32 %s11, 2
        // Predicated region
        $region121: #{segmentation_head_3d.1} parent=119 // pred_check
          %p378 = pneg %p124
        $region122: #{segmentation_head_3d.1} parent=119 // pred_check_branch
          %380 = sbr.rel (%p378) target = $region124
        $region123: #{segmentation_head_3d.1} parent=119 // pred_region
          %s381 = sand.u32 %s109, 1
          %s382 = sand.u32 %s109, 1
          %s383 = smul.addr %s382, 24
          %s384 = scalar_lea.vmem [#allocation7], %s383
        $region124: #{segmentation_head_3d.1} parent=119 // pred_fallthru
          _
      $region120: #{segmentation_head_3d.1} parent=5 // pred_fallthru
        _
    $region6: #{segmentation_head_3d.1} parent=1 // loop_footer
      %s15 = sadd.s32 1, %s11
    $region7: #{segmentation_head_3d.1} parent=1 // loop_footer_branch
      %10 = sbr.rel target = $region3
    $region8: #{segmentation_head_3d.1} parent=1 // loop_exit
      _
    %385 = vsyncpa [#allocation3], 1
    %s386 = scalar_lea.sflag [#allocation3], 1
    %387 = vsyncpa %s386, 1
    %388 = vsyncpa [#allocation5], 1

</llo_original>
